<compile_context>
chip_gen: v5e
topology: v5e:2x2
jax: 0.10.0
libtpu: 0.0.40
codegen_flags: <defaults>
</compile_context>

<pallas_src>
import jax
import jax.numpy as jnp
from jax.experimental import pallas as pl
from jax.experimental.pallas import tpu as pltpu


_VMEM_LIMIT_BYTES = 48 * 1024 * 1024  # stays under v7x's 64 MiB physical VMEM


def _round_up(x, m):
    return ((x + m - 1) // m) * m


def _largest_divisor_leq(n, cap):
    for d in range(min(n, cap), 0, -1):
        if n % d == 0:
            return d
    return 1


def _largest_divisor_leq_step(n, cap, step):
    best = step
    d = step
    while d <= min(n, cap):
        if n % d == 0:
            best = d
        d += step
    return best


# ---------------------------------------------------------------------------
# Phase 1: x_proj = x @ W_ih + (b_ih + b_hh)  -- one big non-recurrent matmul.
# ---------------------------------------------------------------------------
def _input_proj_kernel(x_ref, wih_ref, b_ref, o_ref):
    o_ref[...] = (
        jnp.dot(x_ref[...], wih_ref[...], preferred_element_type=jnp.float32)
        + b_ref[...]
    ).astype(o_ref.dtype)


# ---------------------------------------------------------------------------
# Phase 2: recurrence h_t = tanh(x_proj_t + h_{t-1} @ W_hh); fc on last step.
# ---------------------------------------------------------------------------
def _make_rnn_fc_kernel(time_chunk):
    def kernel(xp_ref, whh_hbm, wfc_ref, bfc_ref, out_ref,
               h_ref, whh_vmem, dma_sem):
        c = pl.program_id(1)  # time-chunk axis: sequential ("arbitrary")

        @pl.when(c == 0)
        def _():
            # One-time copy of the recurrent weight into a single-buffered VMEM
            # scratch (no 2x pipeline buffer), plus hidden-state reset for this
            # batch tile.
            cp = pltpu.make_async_copy(whh_hbm, whh_vmem, dma_sem.at[0])
            cp.start()
            cp.wait()
            h_ref[...] = jnp.zeros_like(h_ref)

        whh = whh_vmem[...]  # hoisted out of the unrolled step loop

        def step(i, h):
            pre = xp_ref[i].astype(jnp.float32) + jnp.dot(
                h.astype(whh.dtype), whh, preferred_element_type=jnp.float32)
            return jnp.tanh(pre)

        h = jax.lax.fori_loop(0, time_chunk, step, h_ref[...], unroll=True)
        h_ref[...] = h

        @pl.when(c == pl.num_programs(1) - 1)
        def _():
            # fc(hidden.squeeze(0)) fused on the last chunk; O padded to 128 so
            # this is a lane-dense store.
            out_ref[...] = (
                jnp.dot(h.astype(wfc_ref.dtype), wfc_ref[...],
                        preferred_element_type=jnp.float32)
                + bfc_ref[...]
            ).astype(out_ref.dtype)

    return kernel


def rnn_classifier_forward(embedded_tm, w_ih, w_hh, b_rnn, w_fc, b_fc, *,
                           compute_dtype=jnp.bfloat16,
                           time_chunk=None, batch_tile=None):
    """embedded_tm: (T, B, E) float32, time-major -> logits (B, O) float32."""
    T, B, E = embedded_tm.shape
    H = w_hh.shape[0]
    O = w_fc.shape[1]

    # ---- pad to hardware tiles: 8 sublanes on batch, 128 lanes on E/H/O.
    B_pad = _round_up(B, 8)
    E_pad = _round_up(E, 128)
    H_pad = _round_up(H, 128)
    O_pad = _round_up(O, 128)

    x = jnp.pad(embedded_tm, ((0, 0), (0, B_pad - B), (0, E_pad - E)))
    x = x.astype(compute_dtype)
    wih = jnp.pad(w_ih, ((0, E_pad - E), (0, H_pad - H))).astype(compute_dtype)
    whh = jnp.pad(w_hh, ((0, H_pad - H), (0, H_pad - H))).astype(compute_dtype)
    brnn = jnp.pad(b_rnn, ((0, 0), (0, H_pad - H))).astype(jnp.float32)
    wfc = jnp.pad(w_fc, ((0, H_pad - H), (0, O_pad - O))).astype(compute_dtype)
    bfc = jnp.pad(b_fc, ((0, 0), (0, O_pad - O))).astype(jnp.float32)

    # ---- tiling choices (the demo shapes collapse to a single grid step each).
    tc = time_chunk or _largest_divisor_leq(T, 16)            # steps per grid step
    tb = batch_tile or _largest_divisor_leq_step(B_pad, 128, 8)
    assert T % tc == 0 and B_pad % tb == 0

    # ===== Phase 1: one big parallel matmul over the flattened (T*B_pad) rows.
    M = T * B_pad
    tm = _largest_divisor_leq_step(M, 512, 8)
    x2d = x.reshape(M, E_pad)
    x_proj = pl.pallas_call(
        _input_proj_kernel,
        out_shape=jax.ShapeDtypeStruct((M, H_pad), compute_dtype),
        grid_spec=pltpu.PrefetchScalarGridSpec(
            num_scalar_prefetch=0,
            grid=(M // tm,),
            in_specs=[
                pl.BlockSpec((tm, E_pad), lambda i: (i, 0)),
                pl.BlockSpec((E_pad, H_pad), lambda i: (0, 0)),
                pl.BlockSpec((1, H_pad), lambda i: (0, 0)),
            ],
            out_specs=pl.BlockSpec((tm, H_pad), lambda i: (i, 0)),
        ),
        compiler_params=pltpu.CompilerParams(
            dimension_semantics=("parallel",),
            vmem_limit_bytes=_VMEM_LIMIT_BYTES,
        ),
    )(x2d, wih, brnn)
    x_proj = x_proj.reshape(T, B_pad, H_pad)

    # ===== Phase 2: serial recurrence over time chunks, batch tiles in parallel.
    logits_pad = pl.pallas_call(
        _make_rnn_fc_kernel(tc),
        out_shape=jax.ShapeDtypeStruct((B_pad, O_pad), jnp.float32),
        grid_spec=pltpu.PrefetchScalarGridSpec(
            num_scalar_prefetch=0,
            grid=(B_pad // tb, T // tc),
            in_specs=[
                pl.BlockSpec((tc, tb, H_pad), lambda bi, c: (c, bi, 0)),
                pl.BlockSpec(memory_space=pl.ANY),       # W_hh stays in HBM
                pl.BlockSpec((H_pad, O_pad), lambda bi, c: (0, 0)),
                pl.BlockSpec((1, O_pad), lambda bi, c: (0, 0)),
            ],
            out_specs=pl.BlockSpec((tb, O_pad), lambda bi, c: (bi, 0)),
            scratch_shapes=[
                pltpu.VMEM((tb, H_pad), jnp.float32),        # persistent hidden state
                pltpu.VMEM((H_pad, H_pad), compute_dtype),   # single-buffered W_hh
                pltpu.SemaphoreType.DMA((1,)),
            ],
        ),
        compiler_params=pltpu.CompilerParams(
            # batch tiles are independent (megacore on v7x); time chunks must
            # run in order -> "arbitrary".
            dimension_semantics=("parallel", "arbitrary"),
            vmem_limit_bytes=_VMEM_LIMIT_BYTES,
        ),
    )(x_proj, whh, wfc, bfc)

    return logits_pad[:B, :O]


def init_params(key, vocab_size, embedding_dim, hidden_dim, output_dim):
    k_emb, k_ih, k_hh, k_bih, k_bhh, k_fc, k_bfc = jax.random.split(key, 7)

    # nn.Embedding: N(0,1), padding_idx=0 row zeroed.
    emb = jax.random.normal(k_emb, (vocab_size, embedding_dim), jnp.float32)
    emb = emb.at[0].set(0.0)

    # nn.RNN: uniform(-1/sqrt(H), 1/sqrt(H)); stored transposed for x @ W.
    bound_rnn = 1.0 / jnp.sqrt(hidden_dim)
    w_ih = jax.random.uniform(k_ih, (embedding_dim, hidden_dim), jnp.float32,
                              -bound_rnn, bound_rnn)
    w_hh = jax.random.uniform(k_hh, (hidden_dim, hidden_dim), jnp.float32,
                              -bound_rnn, bound_rnn)
    b_ih = jax.random.uniform(k_bih, (hidden_dim,), jnp.float32,
                              -bound_rnn, bound_rnn)
    b_hh = jax.random.uniform(k_bhh, (hidden_dim,), jnp.float32,
                              -bound_rnn, bound_rnn)
    b = (b_ih + b_hh).reshape(1, hidden_dim)

    # nn.Linear: uniform(-1/sqrt(H), 1/sqrt(H)); stored transposed for h @ W.
    bound_fc = 1.0 / jnp.sqrt(hidden_dim)
    w_fc = jax.random.uniform(k_fc, (hidden_dim, output_dim), jnp.float32,
                              -bound_fc, bound_fc)
    b_fc = jax.random.uniform(k_bfc, (output_dim,), jnp.float32,
                              -bound_fc, bound_fc).reshape(1, output_dim)

    return emb, w_ih, w_hh, b, w_fc, b_fc


def reference_forward(text, emb, w_ih, w_hh, b, w_fc, b_fc):
    """Pure-JAX reference of the PyTorch forward (for sanity checking)."""
    embedded = jnp.take(emb, text, axis=0)            # (B, T, E)
    B, T, E = embedded.shape
    H = w_hh.shape[0]
    h = jnp.zeros((B, H), jnp.float32)
    for t in range(T):
        h = jnp.tanh(embedded[:, t, :] @ w_ih + h @ w_hh + b)
    return h @ w_fc + b_fc


if __name__ == "__main__":
    # Small shapes consistent with the module (seq, batch, vocab scaled down).
    vocab_size = 100
    embedding_dim = 32
    hidden_dim = 64
    output_dim = 4
    batch = 2
    seq_len = 8

    key = jax.random.PRNGKey(0)
    k_params, k_text = jax.random.split(key)
    emb, w_ih, w_hh, b, w_fc, b_fc = init_params(
        k_params, vocab_size, embedding_dim, hidden_dim, output_dim)

    text = jax.random.randint(k_text, (batch, seq_len), 0, vocab_size,
                              dtype=jnp.int32)

    # TODO(synk): nn.Embedding gather stays in plain JAX glue (data-dependent row
    # gather; not worth a manual DMA-gather kernel at these shapes).
    embedded = jnp.take(emb, text, axis=0)             # (B, T, E)
    embedded_tm = jnp.transpose(embedded, (1, 0, 2))   # (T, B, E) time-major

    ref = reference_forward(text, emb, w_ih, w_hh, b, w_fc, b_fc)

    # float32 path: tight numerical check against the reference.
    logits_f32 = rnn_classifier_forward(embedded_tm, w_ih, w_hh, b, w_fc, b_fc,
                                        compute_dtype=jnp.float32)
    logits_f32 = jax.block_until_ready(logits_f32)
    assert logits_f32.shape == (batch, output_dim)
    assert jnp.allclose(logits_f32, ref, atol=1e-3, rtol=1e-3)

    # bfloat16 path (MXU-friendly weights/x_proj, f32 accumulation): looser check.
    logits_bf16 = rnn_classifier_forward(embedded_tm, w_ih, w_hh, b, w_fc, b_fc,
                                         compute_dtype=jnp.bfloat16)
    logits_bf16 = jax.block_until_ready(logits_bf16)
    assert logits_bf16.shape == (batch, output_dim)
    assert jnp.allclose(logits_bf16, ref, atol=5e-2, rtol=5e-2)

    print("KERNEL_OK")
</pallas_src>

<mosaic_0001>
module attributes {stable_mosaic.version = 11 : i64} {
  func.func @_input_proj_kernel(%arg0: i32, %arg1: memref<64x128xf32, #tpu.memory_space<vmem>>, %arg2: memref<128x128xf32, #tpu.memory_space<vmem>>, %arg3: memref<1x128xf32, #tpu.memory_space<vmem>>, %arg4: memref<64x128xf32, #tpu.memory_space<vmem>>) attributes {dimension_semantics = [#tpu.dimension_semantics<parallel>], iteration_bounds = array<i64: 1>, scalar_prefetch = 0 : i64, scratch_operands = 0 : i64, tpu.core_type = #tpu.core_type<tc>, window_params = [{transform_indices = @transform_0, window_bounds = array<i64: 64, 128>}, {pipeline_mode = #tpu.pipeline_mode<synchronous>, transform_indices = @transform_1, window_bounds = array<i64: 128, 128>}, {pipeline_mode = #tpu.pipeline_mode<synchronous>, transform_indices = @transform_2, window_bounds = array<i64: 1, 128>}, {transform_indices = @transform_3, window_bounds = array<i64: 64, 128>}]} {
    %c0 = arith.constant 0 : index
    %c0_0 = arith.constant 0 : index
    %0 = vector.load %arg1[%c0, %c0_0] : memref<64x128xf32, #tpu.memory_space<vmem>>, vector<64x128xf32>
    %c0_1 = arith.constant 0 : index
    %c0_2 = arith.constant 0 : index
    %1 = vector.load %arg2[%c0_1, %c0_2] : memref<128x128xf32, #tpu.memory_space<vmem>>, vector<128x128xf32>
    %cst = arith.constant dense<0.000000e+00> : vector<64x128xf32>
    %2 = tpu.matmul %0, %1, %cst {dimension_numbers = #tpu.dot_dimension_numbers<[1], [0], [0], [1], [0, 0, 1, 1], [], []>} : vector<64x128xf32>, vector<128x128xf32>, vector<64x128xf32> -> vector<64x128xf32>
    %c0_3 = arith.constant 0 : index
    %c0_4 = arith.constant 0 : index
    %3 = vector.load %arg3[%c0_3, %c0_4] : memref<1x128xf32, #tpu.memory_space<vmem>>, vector<1x128xf32>
    %4 = vector.broadcast %3 : vector<1x128xf32> to vector<64x128xf32>
    %5 = arith.addf %2, %4 : vector<64x128xf32>
    %c0_5 = arith.constant 0 : index
    %c0_6 = arith.constant 0 : index
    %6 = vector.load %arg4[%c0_5, %c0_6] : memref<64x128xf32, #tpu.memory_space<vmem>>, vector<64x128xf32>
    tpu.vector_store %arg4[%c0_5, %c0_6], %5 {strides = array<i32>} : memref<64x128xf32, #tpu.memory_space<vmem>>, vector<64x128xf32>,
    return
  }
  func.func @transform_0(%arg0: i32) -> (i32, i32) {
    %c0_i32 = arith.constant 0 : i32
    %c0_i32_0 = arith.constant 0 : i32
    return %arg0, %c0_i32 : i32, i32
  }
  func.func @transform_1(%arg0: i32) -> (i32, i32) {
    %c0_i32 = arith.constant 0 : i32
    %c0_i32_0 = arith.constant 0 : i32
    %c0_i32_1 = arith.constant 0 : i32
    return %c0_i32, %c0_i32_0 : i32, i32
  }
  func.func @transform_2(%arg0: i32) -> (i32, i32) {
    %c0_i32 = arith.constant 0 : i32
    %c0_i32_0 = arith.constant 0 : i32
    %c0_i32_1 = arith.constant 0 : i32
    return %c0_i32, %c0_i32_0 : i32, i32
  }
  func.func @transform_3(%arg0: i32) -> (i32, i32) {
    %c0_i32 = arith.constant 0 : i32
    %c0_i32_0 = arith.constant 0 : i32
    return %arg0, %c0_i32 : i32, i32
  }
}

</mosaic_0001>

<llo_original>
// kernel: tpu_custom_call.1
$region0: #{tpu_custom_call.1}
  #allocation0 [shape = 'u32[]', space=smem, size = 0x4, offset = 0x4, fixed_abs, tag = 'smem constant byte address 0x4 - core index']
  #allocation1 [shape = 'u32[72,128]{1,0:T(1,128)}', space=vmem, size = 0x9000, scoped, tag = 'internal scratch']
  %s0 = inlined_call_operand.hbm [shape: f32[64,128], index: 0, kind: input, shape index: {}]
  %s1 = inlined_call_operand.hbm [shape: f32[128,128], index: 1, kind: input, shape index: {}]
  %s2 = inlined_call_operand.vmem [shape: f32[1,128], index: 2, kind: input, shape index: {}]
  %s3 = inlined_call_operand.hbm [shape: f32[64,128], index: 3, kind: output, shape index: {}]
  %s4 = sld [smem:[#allocation0]]
  $region30: #{tpu_custom_call.1} parent=0
    _
  %s6 = ssub.s32 1, %s4
  %s7 = scalar_select 0, %s6, %s4
  $region1: #{tpu_custom_call.1} parent=0
    #allocation2 [shape = 'u8[32768]{0}', space=vmem, size = 0x8000, scoped, tag = 'input window, operand 0, single buffered']
    #allocation3 [shape = 's32[1]{0}', space=sflag, size = 0x4, scoped, tag = 'scoped memory for tpu_custom_call.1']
    #allocation4 [shape = 's32[1]{0}', space=sflag, size = 0x4, scoped, tag = 'scoped memory for tpu_custom_call.1']
    #allocation5 [shape = 'u8[65536]{0}', space=vmem, size = 0x10000, scoped, tag = 'input window, operand 1, single buffered']
    #allocation6 [shape = 's32[1]{0}', space=sflag, size = 0x4, scoped, tag = 'scoped memory for tpu_custom_call.1']
    #allocation7 [shape = 'u8[32768]{0}', space=vmem, size = 0x8000, scoped, tag = 'output window, operand 0, single buffered']
    %8 = vsyncpa [#allocation3], 0
    %9 = vsyncpa [#allocation6], 0
    %10 = vsyncpa [#allocation4], 0
    // Predicated region
    $region2: #{tpu_custom_call.1} parent=1 // pred_check
      _
    $region3: #{tpu_custom_call.1} parent=1 // pred_check_branch
      %12 = sbr.rel (0) target = $region5
    $region4: #{tpu_custom_call.1} parent=1 // pred_region
      %14 = vsyncadd [#allocation3], 0
      %s15 = sshll.u32 %s0, 4
      %s16 = int_to_ptr.hbm [resolvable:$true] %s15
      %s17 = sshll.u32 [#allocation2], 4
      %s18 = int_to_ptr.vmem [resolvable:$true] %s17
      %23 = dma.hbm_to_vmem [thread:$0]  %s16, 1024, %s18, [#allocation3], 128, 128, 8
    $region5: #{tpu_custom_call.1} parent=1 // pred_fallthru
      _
    // Predicated region
    $region6: #{tpu_custom_call.1} parent=1 // pred_check
      _
    $region7: #{tpu_custom_call.1} parent=1 // pred_check_branch
      %25 = sbr.rel (0) target = $region9
    $region8: #{tpu_custom_call.1} parent=1 // pred_region
      %27 = vsyncadd [#allocation6], 0
      %s28 = sshll.u32 %s1, 4
      %s29 = int_to_ptr.hbm [resolvable:$true] %s28
      %s30 = sshll.u32 [#allocation5], 4
      %s31 = int_to_ptr.vmem [resolvable:$true] %s30
      %36 = dma.hbm_to_vmem [thread:$0]  %s29, 2048, %s31, [#allocation6], 128, 128, 8
    $region9: #{tpu_custom_call.1} parent=1 // pred_fallthru
      _
    // Predicated region
    $region10: #{tpu_custom_call.1} parent=1 // pred_check
      _
    $region11: #{tpu_custom_call.1} parent=1 // pred_check_branch
      %38 = sbr.rel (0) target = $region13
    $region12: #{tpu_custom_call.1} parent=1 // pred_region
      _
    $region13: #{tpu_custom_call.1} parent=1 // pred_fallthru
      _
    // Predicated region
    $region14: #{tpu_custom_call.1} parent=1 // pred_check
      _
    $region15: #{tpu_custom_call.1} parent=1 // pred_check_branch
      %40 = sbr.rel (0) target = $region17
    $region16: #{tpu_custom_call.1} parent=1 // pred_region
      %42 = dma.done [#allocation3], 1024
    $region17: #{tpu_custom_call.1} parent=1 // pred_fallthru
      _
    // Predicated region
    $region18: #{tpu_custom_call.1} parent=1 // pred_check
      _
    $region19: #{tpu_custom_call.1} parent=1 // pred_check_branch
      %44 = sbr.rel (0) target = $region21
    $region20: #{tpu_custom_call.1} parent=1 // pred_region
      %46 = dma.done [#allocation6], 2048
    $region21: #{tpu_custom_call.1} parent=1 // pred_fallthru
      _
    %v47 = vld [vmem:[#allocation2] sm:$0xff]
    %v48 = vld [vmem:[#allocation2 + $0x8] sm:$0xff]
    %v49 = vld [vmem:[#allocation2 + $0x10] sm:$0xff]
    %v50 = vld [vmem:[#allocation2 + $0x18] sm:$0xff]
    %v51 = vld [vmem:[#allocation2 + $0x20] sm:$0xff]
    %v52 = vld [vmem:[#allocation2 + $0x28] sm:$0xff]
    %v53 = vld [vmem:[#allocation2 + $0x30] sm:$0xff]
    %v54 = vld [vmem:[#allocation2 + $0x38] sm:$0xff]
    %v55 = vld [vmem:[#allocation5] sm:$0xff]
    %v56 = vld [vmem:[#allocation5 + $0x8] sm:$0xff]
    %v57 = vld [vmem:[#allocation5 + $0x10] sm:$0xff]
    %v58 = vld [vmem:[#allocation5 + $0x18] sm:$0xff]
    %v59 = vld [vmem:[#allocation5 + $0x20] sm:$0xff]
    %v60 = vld [vmem:[#allocation5 + $0x28] sm:$0xff]
    %v61 = vld [vmem:[#allocation5 + $0x30] sm:$0xff]
    %v62 = vld [vmem:[#allocation5 + $0x38] sm:$0xff]
    %v63 = vld [vmem:[#allocation5 + $0x40] sm:$0xff]
    %v64 = vld [vmem:[#allocation5 + $0x48] sm:$0xff]
    %v65 = vld [vmem:[#allocation5 + $0x50] sm:$0xff]
    %v66 = vld [vmem:[#allocation5 + $0x58] sm:$0xff]
    %v67 = vld [vmem:[#allocation5 + $0x60] sm:$0xff]
    %v68 = vld [vmem:[#allocation5 + $0x68] sm:$0xff]
    %v69 = vld [vmem:[#allocation5 + $0x70] sm:$0xff]
    %v70 = vld [vmem:[#allocation5 + $0x78] sm:$0xff]
    %v71 = vld [vmem:[%s2] sm:$0x1]
    %v73 = vperm.slane %v71, 0
    %75 = vmatpush.msra.mxu0 %v70
    %76 = vmatpush.msra.mxu0 %v69
    %77 = vmatpush.msra.mxu0 %v68
    %78 = vmatpush.msra.mxu0 %v67
    %79 = vmatpush.msra.mxu0 %v66
    %80 = vmatpush.msra.mxu0 %v65
    %81 = vmatpush.msra.mxu0 %v64
    %82 = vmatpush.msra.mxu0 %v63
    %83 = vmatpush.msra.mxu0 %v62
    %84 = vmatpush.msra.mxu0 %v61
    %85 = vmatpush.msra.mxu0 %v60
    %86 = vmatpush.msra.mxu0 %v59
    %87 = vmatpush.msra.mxu0 %v58
    %88 = vmatpush.msra.mxu0 %v57
    %89 = vmatpush.msra.mxu0 %v56
    %90 = vmatpush.msra.mxu0 %v55
    %91 = vmatmul.f32.gmra.mxu0 %v47
    %v92 = vpop.f32.mrf.mxu0
    %v93 = vadd.f32 %v73, %v92
    %94 = vmatmul.f32.gmra.mxu0 %v48
    %v95 = vpop.f32.mrf.mxu0
    %v96 = vadd.f32 %v73, %v95
    %97 = vmatmul.f32.gmra.mxu0 %v49
    %v98 = vpop.f32.mrf.mxu0
    %v99 = vadd.f32 %v73, %v98
    %100 = vmatmul.f32.gmra.mxu0 %v50
    %v101 = vpop.f32.mrf.mxu0
    %v102 = vadd.f32 %v73, %v101
    %103 = vmatmul.f32.gmra.mxu0 %v51
    %v104 = vpop.f32.mrf.mxu0
    %v105 = vadd.f32 %v73, %v104
    %106 = vmatmul.f32.gmra.mxu0 %v52
    %v107 = vpop.f32.mrf.mxu0
    %v108 = vadd.f32 %v73, %v107
    %109 = vmatmul.f32.gmra.mxu0 %v53
    %v110 = vpop.f32.mrf.mxu0
    %v111 = vadd.f32 %v73, %v110
    %112 = vmatmul.f32.gmra.mxu0 %v54
    %v113 = vpop.f32.mrf.mxu0
    %v114 = vadd.f32 %v73, %v113
    %115 = vdwg.mxu0
    %116 = vst [vmem:[#allocation7] sm:$0xff] %v93
    %117 = vst [vmem:[#allocation7 + $0x8] sm:$0xff] %v96
    %118 = vst [vmem:[#allocation7 + $0x10] sm:$0xff] %v99
    %119 = vst [vmem:[#allocation7 + $0x18] sm:$0xff] %v102
    %120 = vst [vmem:[#allocation7 + $0x20] sm:$0xff] %v105
    %121 = vst [vmem:[#allocation7 + $0x28] sm:$0xff] %v108
    %122 = vst [vmem:[#allocation7 + $0x30] sm:$0xff] %v111
    %123 = vst [vmem:[#allocation7 + $0x38] sm:$0xff] %v114
    // Predicated region
    $region22: #{tpu_custom_call.1} parent=1 // pred_check
      _
    $region23: #{tpu_custom_call.1} parent=1 // pred_check_branch
      %125 = sbr.rel (0) target = $region25
    $region24: #{tpu_custom_call.1} parent=1 // pred_region
      %127 = vsyncadd [#allocation4], 0
      %s128 = sshll.u32 [#allocation7], 4
      %s129 = int_to_ptr.vmem [resolvable:$true] %s128
      %s130 = sshll.u32 %s3, 4
      %s131 = int_to_ptr.hbm [resolvable:$true] %s130
      %136 = dma.vmem_to_hbm [thread:$0]  %s129, 1024, %s131, [#allocation4], 128, 128, 8
    $region25: #{tpu_custom_call.1} parent=1 // pred_fallthru
      _
    // Predicated region
    $region26: #{tpu_custom_call.1} parent=1 // pred_check
      _
    $region27: #{tpu_custom_call.1} parent=1 // pred_check_branch
      %138 = sbr.rel (0) target = $region29
    $region28: #{tpu_custom_call.1} parent=1 // pred_region
      %140 = dma.done [#allocation4], 1024
    $region29: #{tpu_custom_call.1} parent=1 // pred_fallthru
      _
    %141 = vsyncpa [#allocation3], 1
    %142 = vsyncpa [#allocation6], 1
    %143 = vsyncpa [#allocation4], 1

</llo_original>
